<compile_context>
chip_gen: v6e
topology: v6e:2x2x1
jax: 0.10.0
libtpu: 0.0.40
codegen_flags: <defaults>
</compile_context>

<pallas_src>
import jax
import jax.numpy as jnp
from jax import lax
from jax.experimental import pallas as pl
from jax.experimental.pallas import tpu as pltpu


def _mean_conv1x1_kernel(x_ref, w_ref, b_ref, o_ref):
    # x_ref: (N, C, HW) in producer dtype (f32/bf16)
    # w_ref: (Cout, C) f32, already scaled by 1/(H*W)
    # b_ref: (1, Cout) f32
    # o_ref: (N, Cout) in producer dtype
    x = x_ref[...].astype(jnp.float32)           # in-kernel upcast (no-op for f32 input)
    pooled = jnp.sum(x, axis=-1)                 # (N, C); mean scale folded into weight
    y = lax.dot_general(                         # (N, C) x (Cout, C)^T -> (N, Cout) on MXU
        pooled, w_ref[...],
        dimension_numbers=(((1,), (1,)), ((), ())),
        preferred_element_type=jnp.float32)
    o_ref[...] = (y + b_ref[...]).astype(o_ref.dtype)


def mean_conv2d_1x1(x_nchw, weight, bias):
    """x_nchw: (N, C, H, W); weight: (Cout, C, 1, 1); bias: (Cout,) -> (N, Cout, 1, 1)."""
    N, C, H, W = x_nchw.shape
    Cout = weight.shape[0]
    inv_hw = 1.0 / float(H * W)

    # No dtype cast on the (dominant) activation tensor; reshape only.
    x_flat = x_nchw.reshape(N, C, H * W)
    # Tiny parameter prep on host: fold the mean scale into the weight, no transpose.
    w2 = (weight.reshape(Cout, C) * inv_hw).astype(jnp.float32)   # (Cout, C)
    b2 = bias.reshape(1, Cout).astype(jnp.float32)                # (1, Cout)

    out = pl.pallas_call(
        _mean_conv1x1_kernel,
        out_shape=jax.ShapeDtypeStruct((N, Cout), x_nchw.dtype),
        in_specs=[
            pl.BlockSpec(memory_space=pltpu.MemorySpace.VMEM),
            pl.BlockSpec(memory_space=pltpu.MemorySpace.VMEM),
            pl.BlockSpec(memory_space=pltpu.MemorySpace.VMEM),
        ],
        out_specs=pl.BlockSpec(memory_space=pltpu.MemorySpace.VMEM),
    )(x_flat, w2, b2)

    return out.reshape(N, Cout, 1, 1)


if __name__ == "__main__":
    key = jax.random.PRNGKey(0)
    k_x, k_w, k_b = jax.random.split(key, 3)

    # Module-mandated channel sizes (Conv2d(240, 10, 1)); small batch / spatial.
    N, C_in, C_out, H, W = 2, 240, 10, 16, 16

    x = jax.random.normal(k_x, (N, C_in, H, W), dtype=jnp.float32)
    # Deterministic synthetic parameters (shapes match nn.Conv2d(240, 10, 1)).
    weight = jax.random.normal(k_w, (C_out, C_in, 1, 1), dtype=jnp.float32) * (1.0 / C_in) ** 0.5
    bias = jax.random.normal(k_b, (C_out,), dtype=jnp.float32) * 0.01

    y = mean_conv2d_1x1(x, weight, bias)
    y = jax.block_until_ready(y)

    # Cross-check against plain-JAX reference (mean-pool then 1x1 conv).
    pooled_ref = jnp.mean(x, axis=(2, 3))                                   # (N, C_in)
    y_ref = (pooled_ref @ weight.reshape(C_out, C_in).T + bias).reshape(N, C_out, 1, 1)
    assert y.shape == (N, C_out, 1, 1)
    assert y.dtype == x.dtype
    assert jnp.allclose(y, y_ref, atol=1e-5, rtol=1e-5)

    print("KERNEL_OK")
</pallas_src>

<mosaic_0001>
module attributes {stable_mosaic.version = 11 : i64} {
  func.func @_mean_conv1x1_kernel(%arg0: memref<2x240x256xf32, #tpu.memory_space<vmem>>, %arg1: memref<10x240xf32, #tpu.memory_space<vmem>>, %arg2: memref<1x10xf32, #tpu.memory_space<vmem>>, %arg3: memref<2x10xf32, #tpu.memory_space<vmem>>) attributes {dimension_semantics = [], scalar_prefetch = 0 : i64, scratch_operands = 0 : i64, tpu.core_type = #tpu.core_type<tc>} {
    %c0 = arith.constant 0 : index
    %c0_0 = arith.constant 0 : index
    %c0_1 = arith.constant 0 : index
    %0 = vector.load %arg0[%c0, %c0_0, %c0_1] : memref<2x240x256xf32, #tpu.memory_space<vmem>>, vector<2x240x256xf32>
    %cst = arith.constant dense<0.000000e+00> : vector<2x240xf32>
    %1 = vector.multi_reduction <add>, %0, %cst [2] : vector<2x240x256xf32> to vector<2x240xf32>
    %c0_2 = arith.constant 0 : index
    %c0_3 = arith.constant 0 : index
    %2 = vector.load %arg1[%c0_2, %c0_3] : memref<10x240xf32, #tpu.memory_space<vmem>>, vector<10x240xf32>
    %cst_4 = arith.constant dense<0.000000e+00> : vector<2x10xf32>
    %3 = tpu.matmul %1, %2, %cst_4 {dimension_numbers = #tpu.dot_dimension_numbers<[1], [1], [0], [0], [0, 0, 1, 0], [], []>} : vector<2x240xf32>, vector<10x240xf32>, vector<2x10xf32> -> vector<2x10xf32>
    %c0_5 = arith.constant 0 : index
    %c0_6 = arith.constant 0 : index
    %4 = vector.load %arg2[%c0_5, %c0_6] : memref<1x10xf32, #tpu.memory_space<vmem>>, vector<1x10xf32>
    %5 = vector.broadcast %4 : vector<1x10xf32> to vector<2x10xf32>
    %6 = arith.addf %3, %5 : vector<2x10xf32>
    %c0_7 = arith.constant 0 : index
    %c0_8 = arith.constant 0 : index
    %7 = vector.load %arg3[%c0_7, %c0_8] : memref<2x10xf32, #tpu.memory_space<vmem>>, vector<2x10xf32>
    tpu.vector_store %arg3[%c0_7, %c0_8], %6 {strides = array<i32>} : memref<2x10xf32, #tpu.memory_space<vmem>>, vector<2x10xf32>,
    return
  }
}

</mosaic_0001>

<llo_original>
// kernel: tpu_custom_call.1
$region0: #{tpu_custom_call.1}
  #allocation0 [shape = 'u32[]', space=smem, size = 0x4, offset = 0x4, fixed_abs, tag = 'smem constant byte address 0x4 - core index']
  #allocation1 [shape = 'u32[144,128]{1,0:T(1,128)}', space=vmem, size = 0x12000, scoped, tag = 'internal scratch']
  %s0 = inlined_call_operand.hbm [shape: f32[2,240,256], index: 0, kind: input, shape index: {}]
  %s1 = inlined_call_operand.hbm [shape: f32[10,240], index: 1, kind: input, shape index: {}]
  %s2 = inlined_call_operand.vmem [shape: f32[1,10], index: 2, kind: input, shape index: {}]
  %s3 = inlined_call_operand.hbm [shape: f32[2,10], index: 3, kind: output, shape index: {}]
  %s4 = sld [smem:[#allocation0]]
  $region30: #{tpu_custom_call.1} parent=0
    _
  %s6 = ssub.s32 1, %s4
  %s7 = scalar_select 0, %s6, %s4
  $region1: #{tpu_custom_call.1} parent=0
    #allocation2 [shape = 'u8[491520]{0}', space=vmem, size = 0x78000, scoped, tag = 'input window, operand 0, single buffered']
    #allocation3 [shape = 's32[1]{0}', space=sflag, size = 0x4, scoped, tag = 'scoped memory for tpu_custom_call.1']
    #allocation4 [shape = 's32[1]{0}', space=sflag, size = 0x4, scoped, tag = 'scoped memory for tpu_custom_call.1']
    #allocation5 [shape = 'u8[16384]{0}', space=vmem, size = 0x4000, scoped, tag = 'input window, operand 1, single buffered']
    #allocation6 [shape = 's32[1]{0}', space=sflag, size = 0x4, scoped, tag = 'scoped memory for tpu_custom_call.1']
    #allocation7 [shape = 'u8[1024]{0}', space=vmem, size = 0x400, scoped, tag = 'output window, operand 0, single buffered']
    %8 = vsyncpa [#allocation3], 0
    %9 = vsyncpa [#allocation6], 0
    %10 = vsyncpa [#allocation4], 0
    // Predicated region
    $region2: #{tpu_custom_call.1} parent=1 // pred_check
      _
    $region3: #{tpu_custom_call.1} parent=1 // pred_check_branch
      %12 = sbr.rel (0) target = $region5
    $region4: #{tpu_custom_call.1} parent=1 // pred_region
      %s14 = ssub.s32 15360, 15360
      %15 = vsyncadd [#allocation3], %s14
      %s16 = sshll.u32 [#allocation2], 4
      %s17 = int_to_ptr.vmem [resolvable:$true] %s16
      %22 = dma.hbm_to_vmem [thread:$0]  %s0, 15360, %s17, [#allocation3], 256, 256, 16
    $region5: #{tpu_custom_call.1} parent=1 // pred_fallthru
      _
    // Predicated region
    $region6: #{tpu_custom_call.1} parent=1 // pred_check
      _
    $region7: #{tpu_custom_call.1} parent=1 // pred_check_branch
      %24 = sbr.rel (0) target = $region9
    $region8: #{tpu_custom_call.1} parent=1 // pred_region
      %s26 = ssub.s32 512, 512
      %27 = vsyncadd [#allocation6], %s26
      %s28 = sshll.u32 [#allocation5], 4
      %s29 = int_to_ptr.vmem [resolvable:$true] %s28
      %34 = dma.hbm_to_vmem [thread:$0]  %s1, 512, %s29, [#allocation6], 256, 256, 16
    $region9: #{tpu_custom_call.1} parent=1 // pred_fallthru
      _
    // Predicated region
    $region10: #{tpu_custom_call.1} parent=1 // pred_check
      _
    $region11: #{tpu_custom_call.1} parent=1 // pred_check_branch
      %36 = sbr.rel (0) target = $region13
    $region12: #{tpu_custom_call.1} parent=1 // pred_region
      _
    $region13: #{tpu_custom_call.1} parent=1 // pred_fallthru
      _
    // Predicated region
    $region14: #{tpu_custom_call.1} parent=1 // pred_check
      _
    $region15: #{tpu_custom_call.1} parent=1 // pred_check_branch
      %38 = sbr.rel (0) target = $region17
    $region16: #{tpu_custom_call.1} parent=1 // pred_region
      %39 = dma.done [#allocation3], 15360
    $region17: #{tpu_custom_call.1} parent=1 // pred_fallthru
      _
    // Predicated region
    $region18: #{tpu_custom_call.1} parent=1 // pred_check
      _
    $region19: #{tpu_custom_call.1} parent=1 // pred_check_branch
      %41 = sbr.rel (0) target = $region21
    $region20: #{tpu_custom_call.1} parent=1 // pred_region
      %42 = dma.done [#allocation6], 512
    $region21: #{tpu_custom_call.1} parent=1 // pred_fallthru
      _
    %v43 = vld [vmem:[#allocation2] sm:$0xff]
    %v44 = vld [vmem:[#allocation2 + $0x8] sm:$0xff]
    %v45 = vld [vmem:[#allocation2 + $0x10] sm:$0xff]
    %v46 = vld [vmem:[#allocation2 + $0x18] sm:$0xff]
    %v47 = vld [vmem:[#allocation2 + $0x20] sm:$0xff]
    %v48 = vld [vmem:[#allocation2 + $0x28] sm:$0xff]
    %v49 = vld [vmem:[#allocation2 + $0x30] sm:$0xff]
    %v50 = vld [vmem:[#allocation2 + $0x38] sm:$0xff]
    %v51 = vld [vmem:[#allocation2 + $0x40] sm:$0xff]
    %v52 = vld [vmem:[#allocation2 + $0x48] sm:$0xff]
    %v53 = vld [vmem:[#allocation2 + $0x50] sm:$0xff]
    %v54 = vld [vmem:[#allocation2 + $0x58] sm:$0xff]
    %v55 = vld [vmem:[#allocation2 + $0x60] sm:$0xff]
    %v56 = vld [vmem:[#allocation2 + $0x68] sm:$0xff]
    %v57 = vld [vmem:[#allocation2 + $0x70] sm:$0xff]
    %v58 = vld [vmem:[#allocation2 + $0x78] sm:$0xff]
    %v59 = vld [vmem:[#allocation2 + $0x80] sm:$0xff]
    %v60 = vld [vmem:[#allocation2 + $0x88] sm:$0xff]
    %v61 = vld [vmem:[#allocation2 + $0x90] sm:$0xff]
    %v62 = vld [vmem:[#allocation2 + $0x98] sm:$0xff]
    %v63 = vld [vmem:[#allocation2 + $0xa0] sm:$0xff]
    %v64 = vld [vmem:[#allocation2 + $0xa8] sm:$0xff]
    %v65 = vld [vmem:[#allocation2 + $0xb0] sm:$0xff]
    %v66 = vld [vmem:[#allocation2 + $0xb8] sm:$0xff]
    %v67 = vld [vmem:[#allocation2 + $0xc0] sm:$0xff]
    %v68 = vld [vmem:[#allocation2 + $0xc8] sm:$0xff]
    %v69 = vld [vmem:[#allocation2 + $0xd0] sm:$0xff]
    %v70 = vld [vmem:[#allocation2 + $0xd8] sm:$0xff]
    %v71 = vld [vmem:[#allocation2 + $0xe0] sm:$0xff]
    %v72 = vld [vmem:[#allocation2 + $0xe8] sm:$0xff]
    %v73 = vld [vmem:[#allocation2 + $0xf0] sm:$0xff]
    %v74 = vld [vmem:[#allocation2 + $0xf8] sm:$0xff]
    %v75 = vld [vmem:[#allocation2 + $0x100] sm:$0xff]
    %v76 = vld [vmem:[#allocation2 + $0x108] sm:$0xff]
    %v77 = vld [vmem:[#allocation2 + $0x110] sm:$0xff]
    %v78 = vld [vmem:[#allocation2 + $0x118] sm:$0xff]
    %v79 = vld [vmem:[#allocation2 + $0x120] sm:$0xff]
    %v80 = vld [vmem:[#allocation2 + $0x128] sm:$0xff]
    %v81 = vld [vmem:[#allocation2 + $0x130] sm:$0xff]
    %v82 = vld [vmem:[#allocation2 + $0x138] sm:$0xff]
    %v83 = vld [vmem:[#allocation2 + $0x140] sm:$0xff]
    %v84 = vld [vmem:[#allocation2 + $0x148] sm:$0xff]
    %v85 = vld [vmem:[#allocation2 + $0x150] sm:$0xff]
    %v86 = vld [vmem:[#allocation2 + $0x158] sm:$0xff]
    %v87 = vld [vmem:[#allocation2 + $0x160] sm:$0xff]
    %v88 = vld [vmem:[#allocation2 + $0x168] sm:$0xff]
    %v89 = vld [vmem:[#allocation2 + $0x170] sm:$0xff]
    %v90 = vld [vmem:[#allocation2 + $0x178] sm:$0xff]
    %v91 = vld [vmem:[#allocation2 + $0x180] sm:$0xff]
    %v92 = vld [vmem:[#allocation2 + $0x188] sm:$0xff]
    %v93 = vld [vmem:[#allocation2 + $0x190] sm:$0xff]
    %v94 = vld [vmem:[#allocation2 + $0x198] sm:$0xff]
    %v95 = vld [vmem:[#allocation2 + $0x1a0] sm:$0xff]
    %v96 = vld [vmem:[#allocation2 + $0x1a8] sm:$0xff]
    %v97 = vld [vmem:[#allocation2 + $0x1b0] sm:$0xff]
    %v98 = vld [vmem:[#allocation2 + $0x1b8] sm:$0xff]
    %v99 = vld [vmem:[#allocation2 + $0x1c0] sm:$0xff]
    %v100 = vld [vmem:[#allocation2 + $0x1c8] sm:$0xff]
    %v101 = vld [vmem:[#allocation2 + $0x1d0] sm:$0xff]
    %v102 = vld [vmem:[#allocation2 + $0x1d8] sm:$0xff]
    %v103 = vld [vmem:[#allocation2 + $0x1e0] sm:$0xff]
    %v104 = vld [vmem:[#allocation2 + $0x1e8] sm:$0xff]
    %v105 = vld [vmem:[#allocation2 + $0x1f0] sm:$0xff]
    %v106 = vld [vmem:[#allocation2 + $0x1f8] sm:$0xff]
    %v107 = vld [vmem:[#allocation2 + $0x200] sm:$0xff]
    %v108 = vld [vmem:[#allocation2 + $0x208] sm:$0xff]
    %v109 = vld [vmem:[#allocation2 + $0x210] sm:$0xff]
    %v110 = vld [vmem:[#allocation2 + $0x218] sm:$0xff]
    %v111 = vld [vmem:[#allocation2 + $0x220] sm:$0xff]
    %v112 = vld [vmem:[#allocation2 + $0x228] sm:$0xff]
    %v113 = vld [vmem:[#allocation2 + $0x230] sm:$0xff]
    %v114 = vld [vmem:[#allocation2 + $0x238] sm:$0xff]
    %v115 = vld [vmem:[#allocation2 + $0x240] sm:$0xff]
    %v116 = vld [vmem:[#allocation2 + $0x248] sm:$0xff]
    %v117 = vld [vmem:[#allocation2 + $0x250] sm:$0xff]
    %v118 = vld [vmem:[#allocation2 + $0x258] sm:$0xff]
    %v119 = vld [vmem:[#allocation2 + $0x260] sm:$0xff]
    %v120 = vld [vmem:[#allocation2 + $0x268] sm:$0xff]
    %v121 = vld [vmem:[#allocation2 + $0x270] sm:$0xff]
    %v122 = vld [vmem:[#allocation2 + $0x278] sm:$0xff]
    %v123 = vld [vmem:[#allocation2 + $0x280] sm:$0xff]
    %v124 = vld [vmem:[#allocation2 + $0x288] sm:$0xff]
    %v125 = vld [vmem:[#allocation2 + $0x290] sm:$0xff]
    %v126 = vld [vmem:[#allocation2 + $0x298] sm:$0xff]
    %v127 = vld [vmem:[#allocation2 + $0x2a0] sm:$0xff]
    %v128 = vld [vmem:[#allocation2 + $0x2a8] sm:$0xff]
    %v129 = vld [vmem:[#allocation2 + $0x2b0] sm:$0xff]
    %v130 = vld [vmem:[#allocation2 + $0x2b8] sm:$0xff]
    %v131 = vld [vmem:[#allocation2 + $0x2c0] sm:$0xff]
    %v132 = vld [vmem:[#allocation2 + $0x2c8] sm:$0xff]
    %v133 = vld [vmem:[#allocation2 + $0x2d0] sm:$0xff]
    %v134 = vld [vmem:[#allocation2 + $0x2d8] sm:$0xff]
    %v135 = vld [vmem:[#allocation2 + $0x2e0] sm:$0xff]
    %v136 = vld [vmem:[#allocation2 + $0x2e8] sm:$0xff]
    %v137 = vld [vmem:[#allocation2 + $0x2f0] sm:$0xff]
    %v138 = vld [vmem:[#allocation2 + $0x2f8] sm:$0xff]
    %v139 = vld [vmem:[#allocation2 + $0x300] sm:$0xff]
    %v140 = vld [vmem:[#allocation2 + $0x308] sm:$0xff]
    %v141 = vld [vmem:[#allocation2 + $0x310] sm:$0xff]
    %v142 = vld [vmem:[#allocation2 + $0x318] sm:$0xff]
    %v143 = vld [vmem:[#allocation2 + $0x320] sm:$0xff]
    %v144 = vld [vmem:[#allocation2 + $0x328] sm:$0xff]
    %v145 = vld [vmem:[#allocation2 + $0x330] sm:$0xff]
    %v146 = vld [vmem:[#allocation2 + $0x338] sm:$0xff]
    %v147 = vld [vmem:[#allocation2 + $0x340] sm:$0xff]
    %v148 = vld [vmem:[#allocation2 + $0x348] sm:$0xff]
    %v149 = vld [vmem:[#allocation2 + $0x350] sm:$0xff]
    %v150 = vld [vmem:[#allocation2 + $0x358] sm:$0xff]
    %v151 = vld [vmem:[#allocation2 + $0x360] sm:$0xff]
    %v152 = vld [vmem:[#allocation2 + $0x368] sm:$0xff]
    %v153 = vld [vmem:[#allocation2 + $0x370] sm:$0xff]
    %v154 = vld [vmem:[#allocation2 + $0x378] sm:$0xff]
    %v155 = vld [vmem:[#allocation2 + $0x380] sm:$0xff]
    %v156 = vld [vmem:[#allocation2 + $0x388] sm:$0xff]
    %v157 = vld [vmem:[#allocation2 + $0x390] sm:$0xff]
    %v158 = vld [vmem:[#allocation2 + $0x398] sm:$0xff]
    %v159 = vld [vmem:[#allocation2 + $0x3a0] sm:$0xff]
    %v160 = vld [vmem:[#allocation2 + $0x3a8] sm:$0xff]
    %v161 = vld [vmem:[#allocation2 + $0x3b0] sm:$0xff]
    %v162 = vld [vmem:[#allocation2 + $0x3b8] sm:$0xff]
    %v163 = vadd.f32 %v43, %v44
    %164 = vadd.xlane.f32.xlu0 %v163
    %v165 = vpop.xlane.xlu0 %164
    %v166 = vadd.f32 %v45, %v46
    %167 = vadd.xlane.f32.xlu0 %v166
    %v168 = vpop.xlane.xlu0 %167
    %v169 = vadd.f32 %v47, %v48
    %170 = vadd.xlane.f32.xlu0 %v169
    %v171 = vpop.xlane.xlu0 %170
    %v172 = vadd.f32 %v49, %v50
    %173 = vadd.xlane.f32.xlu0 %v172
    %v174 = vpop.xlane.xlu0 %173
    %v175 = vadd.f32 %v51, %v52
    %176 = vadd.xlane.f32.xlu0 %v175
    %v177 = vpop.xlane.xlu0 %176
    %v178 = vadd.f32 %v53, %v54
    %179 = vadd.xlane.f32.xlu0 %v178
    %v180 = vpop.xlane.xlu0 %179
    %v181 = vadd.f32 %v55, %v56
    %182 = vadd.xlane.f32.xlu0 %v181
    %v183 = vpop.xlane.xlu0 %182
    %v184 = vadd.f32 %v57, %v58
    %185 = vadd.xlane.f32.xlu0 %v184
    %v186 = vpop.xlane.xlu0 %185
    %v187 = vadd.f32 %v59, %v60
    %188 = vadd.xlane.f32.xlu0 %v187
    %v189 = vpop.xlane.xlu0 %188
    %v190 = vadd.f32 %v61, %v62
    %191 = vadd.xlane.f32.xlu0 %v190
    %v192 = vpop.xlane.xlu0 %191
    %v193 = vadd.f32 %v63, %v64
    %194 = vadd.xlane.f32.xlu0 %v193
    %v195 = vpop.xlane.xlu0 %194
    %v196 = vadd.f32 %v65, %v66
    %197 = vadd.xlane.f32.xlu0 %v196
    %v198 = vpop.xlane.xlu0 %197
    %v199 = vadd.f32 %v67, %v68
    %200 = vadd.xlane.f32.xlu0 %v199
    %v201 = vpop.xlane.xlu0 %200
    %v202 = vadd.f32 %v69, %v70
    %203 = vadd.xlane.f32.xlu0 %v202
    %v204 = vpop.xlane.xlu0 %203
    %v205 = vadd.f32 %v71, %v72
    %206 = vadd.xlane.f32.xlu0 %v205
    %v207 = vpop.xlane.xlu0 %206
    %v208 = vadd.f32 %v73, %v74
    %209 = vadd.xlane.f32.xlu0 %v208
    %v210 = vpop.xlane.xlu0 %209
    %v211 = vadd.f32 %v75, %v76
    %212 = vadd.xlane.f32.xlu0 %v211
    %v213 = vpop.xlane.xlu0 %212
    %v214 = vadd.f32 %v77, %v78
    %215 = vadd.xlane.f32.xlu0 %v214
    %v216 = vpop.xlane.xlu0 %215
    %v217 = vadd.f32 %v79, %v80
    %218 = vadd.xlane.f32.xlu0 %v217
    %v219 = vpop.xlane.xlu0 %218
    %v220 = vadd.f32 %v81, %v82
    %221 = vadd.xlane.f32.xlu0 %v220
    %v222 = vpop.xlane.xlu0 %221
    %v223 = vadd.f32 %v83, %v84
    %224 = vadd.xlane.f32.xlu0 %v223
    %v225 = vpop.xlane.xlu0 %224
    %v226 = vadd.f32 %v85, %v86
    %227 = vadd.xlane.f32.xlu0 %v226
    %v228 = vpop.xlane.xlu0 %227
    %v229 = vadd.f32 %v87, %v88
    %230 = vadd.xlane.f32.xlu0 %v229
    %v231 = vpop.xlane.xlu0 %230
    %v232 = vadd.f32 %v89, %v90
    %233 = vadd.xlane.f32.xlu0 %v232
    %v234 = vpop.xlane.xlu0 %233
    %v235 = vadd.f32 %v91, %v92
    %236 = vadd.xlane.f32.xlu0 %v235
    %v237 = vpop.xlane.xlu0 %236
    %v238 = vadd.f32 %v93, %v94
    %239 = vadd.xlane.f32.xlu0 %v238
    %v240 = vpop.xlane.xlu0 %239
    %v241 = vadd.f32 %v95, %v96
    %242 = vadd.xlane.f32.xlu0 %v241
    %v243 = vpop.xlane.xlu0 %242
    %v244 = vadd.f32 %v97, %v98
    %245 = vadd.xlane.f32.xlu0 %v244
    %v246 = vpop.xlane.xlu0 %245
    %v247 = vadd.f32 %v99, %v100
    %248 = vadd.xlane.f32.xlu0 %v247
    %v249 = vpop.xlane.xlu0 %248
    %v250 = vadd.f32 %v101, %v102
    %251 = vadd.xlane.f32.xlu0 %v250
    %v252 = vpop.xlane.xlu0 %251
    %v253 = vadd.f32 %v103, %v104
    %254 = vadd.xlane.f32.xlu0 %v253
    %v255 = vpop.xlane.xlu0 %254
    %v256 = vadd.f32 %v105, %v106
    %257 = vadd.xlane.f32.xlu0 %v256
    %v258 = vpop.xlane.xlu0 %257
    %v259 = vadd.f32 %v107, %v108
    %260 = vadd.xlane.f32.xlu0 %v259
    %v261 = vpop.xlane.xlu0 %260
    %v262 = vadd.f32 %v109, %v110
    %263 = vadd.xlane.f32.xlu0 %v262
    %v264 = vpop.xlane.xlu0 %263
    %v265 = vadd.f32 %v111, %v112
    %266 = vadd.xlane.f32.xlu0 %v265
    %v267 = vpop.xlane.xlu0 %266
    %v268 = vadd.f32 %v113, %v114
    %269 = vadd.xlane.f32.xlu0 %v268
    %v270 = vpop.xlane.xlu0 %269
    %v271 = vadd.f32 %v115, %v116
    %272 = vadd.xlane.f32.xlu0 %v271
    %v273 = vpop.xlane.xlu0 %272
    %v274 = vadd.f32 %v117, %v118
    %275 = vadd.xlane.f32.xlu0 %v274
    %v276 = vpop.xlane.xlu0 %275
    %v277 = vadd.f32 %v119, %v120
    %278 = vadd.xlane.f32.xlu0 %v277
    %v279 = vpop.xlane.xlu0 %278
    %v280 = vadd.f32 %v121, %v122
    %281 = vadd.xlane.f32.xlu0 %v280
    %v282 = vpop.xlane.xlu0 %281
    %v283 = vadd.f32 %v123, %v124
    %284 = vadd.xlane.f32.xlu0 %v283
    %v285 = vpop.xlane.xlu0 %284
    %v286 = vadd.f32 %v125, %v126
    %287 = vadd.xlane.f32.xlu0 %v286
    %v288 = vpop.xlane.xlu0 %287
    %v289 = vadd.f32 %v127, %v128
    %290 = vadd.xlane.f32.xlu0 %v289
    %v291 = vpop.xlane.xlu0 %290
    %v292 = vadd.f32 %v129, %v130
    %293 = vadd.xlane.f32.xlu0 %v292
    %v294 = vpop.xlane.xlu0 %293
    %v295 = vadd.f32 %v131, %v132
    %296 = vadd.xlane.f32.xlu0 %v295
    %v297 = vpop.xlane.xlu0 %296
    %v298 = vadd.f32 %v133, %v134
    %299 = vadd.xlane.f32.xlu0 %v298
    %v300 = vpop.xlane.xlu0 %299
    %v301 = vadd.f32 %v135, %v136
    %302 = vadd.xlane.f32.xlu0 %v301
    %v303 = vpop.xlane.xlu0 %302
    %v304 = vadd.f32 %v137, %v138
    %305 = vadd.xlane.f32.xlu0 %v304
    %v306 = vpop.xlane.xlu0 %305
    %v307 = vadd.f32 %v139, %v140
    %308 = vadd.xlane.f32.xlu0 %v307
    %v309 = vpop.xlane.xlu0 %308
    %v310 = vadd.f32 %v141, %v142
    %311 = vadd.xlane.f32.xlu0 %v310
    %v312 = vpop.xlane.xlu0 %311
    %v313 = vadd.f32 %v143, %v144
    %314 = vadd.xlane.f32.xlu0 %v313
    %v315 = vpop.xlane.xlu0 %314
    %v316 = vadd.f32 %v145, %v146
    %317 = vadd.xlane.f32.xlu0 %v316
    %v318 = vpop.xlane.xlu0 %317
    %v319 = vadd.f32 %v147, %v148
    %320 = vadd.xlane.f32.xlu0 %v319
    %v321 = vpop.xlane.xlu0 %320
    %v322 = vadd.f32 %v149, %v150
    %323 = vadd.xlane.f32.xlu0 %v322
    %v324 = vpop.xlane.xlu0 %323
    %v325 = vadd.f32 %v151, %v152
    %326 = vadd.xlane.f32.xlu0 %v325
    %v327 = vpop.xlane.xlu0 %326
    %v328 = vadd.f32 %v153, %v154
    %329 = vadd.xlane.f32.xlu0 %v328
    %v330 = vpop.xlane.xlu0 %329
    %v331 = vadd.f32 %v155, %v156
    %332 = vadd.xlane.f32.xlu0 %v331
    %v333 = vpop.xlane.xlu0 %332
    %v334 = vadd.f32 %v157, %v158
    %335 = vadd.xlane.f32.xlu0 %v334
    %v336 = vpop.xlane.xlu0 %335
    %v337 = vadd.f32 %v159, %v160
    %338 = vadd.xlane.f32.xlu0 %v337
    %v339 = vpop.xlane.xlu0 %338
    %v340 = vadd.f32 %v161, %v162
    %341 = vadd.xlane.f32.xlu0 %v340
    %v342 = vpop.xlane.xlu0 %341
    %v343 = vld [vmem:[#allocation5] sm:$0xff]
    %v344 = vld [vmem:[#allocation5 + $0x8] sm:$0xff]
    %v345 = vld [vmem:[#allocation5 + $0x10] sm:$0x3]
    %v346 = vld [vmem:[#allocation5 + $0x18] sm:$0x3]
    %v347 = vld [vmem:[%s2] sm:$0x1]
    %v349 = vlaneseq
    %v350 = vshrl.u32 %v349, 7
    %v351 = vsub.s32 0, %v350
    %v352 = vrot.slane %v347, %v351
    %v414 = vlaneseq
    %v415 = vand.u32 %v414, 127
    %v416 = vlaneseq
    %v417 = vshrl.u32 %v416, 7
    %v418 = vsub.s32 %v415, %v417
    %v419 = vrot.slane %v165, %v418
    %v420 = vadd.s32 %v415, 4294967288
    %v421 = vlaneseq
    %v422 = vshrl.u32 %v421, 7
    %v423 = vsub.s32 %v420, %v422
    %v424 = vrot.slane %v168, %v423
    %vm425 = vcmask 130112
    %v426 = vsel %vm425, %v424, %v419
    %v427 = vadd.s32 %v415, 4294967280
    %v428 = vlaneseq
    %v429 = vshrl.u32 %v428, 7
    %v430 = vsub.s32 %v427, %v429
    %v431 = vrot.slane %v171, %v430
    %vm432 = vcmask 195712
    %v433 = vsel %vm432, %v431, %v426
    %v434 = vadd.s32 %v415, 4294967272
    %v435 = vlaneseq
    %v436 = vshrl.u32 %v435, 7
    %v437 = vsub.s32 %v434, %v436
    %v438 = vrot.slane %v174, %v437
    %vm439 = vcmask 261312
    %v440 = vsel %vm439, %v438, %v433
    %v441 = vadd.s32 %v415, 4294967264
    %v442 = vlaneseq
    %v443 = vshrl.u32 %v442, 7
    %v444 = vsub.s32 %v441, %v443
    %v445 = vrot.slane %v177, %v444
    %vm446 = vcmask 326912
    %v447 = vsel %vm446, %v445, %v440
    %v448 = vadd.s32 %v415, 4294967256
    %v449 = vlaneseq
    %v450 = vshrl.u32 %v449, 7
    %v451 = vsub.s32 %v448, %v450
    %v452 = vrot.slane %v180, %v451
    %vm453 = vcmask 392512
    %v454 = vsel %vm453, %v452, %v447
    %v455 = vadd.s32 %v415, 4294967248
    %v456 = vlaneseq
    %v457 = vshrl.u32 %v456, 7
    %v458 = vsub.s32 %v455, %v457
    %v459 = vrot.slane %v183, %v458
    %vm460 = vcmask 458112
    %v461 = vsel %vm460, %v459, %v454
    %v462 = vadd.s32 %v415, 4294967240
    %v463 = vlaneseq
    %v464 = vshrl.u32 %v463, 7
    %v465 = vsub.s32 %v462, %v464
    %v466 = vrot.slane %v186, %v465
    %vm467 = vcmask 523712
    %v468 = vsel %vm467, %v466, %v461
    %v469 = vadd.s32 %v415, 4294967232
    %v470 = vlaneseq
    %v471 = vshrl.u32 %v470, 7
    %v472 = vsub.s32 %v469, %v471
    %v473 = vrot.slane %v189, %v472
    %vm474 = vcmask 589312
    %v475 = vsel %vm474, %v473, %v468
    %v476 = vadd.s32 %v415, 4294967224
    %v477 = vlaneseq
    %v478 = vshrl.u32 %v477, 7
    %v479 = vsub.s32 %v476, %v478
    %v480 = vrot.slane %v192, %v479
    %vm481 = vcmask 654912
    %v482 = vsel %vm481, %v480, %v475
    %v483 = vadd.s32 %v415, 4294967216
    %v484 = vlaneseq
    %v485 = vshrl.u32 %v484, 7
    %v486 = vsub.s32 %v483, %v485
    %v487 = vrot.slane %v195, %v486
    %vm488 = vcmask 720512
    %v489 = vsel %vm488, %v487, %v482
    %v490 = vadd.s32 %v415, 4294967208
    %v491 = vlaneseq
    %v492 = vshrl.u32 %v491, 7
    %v493 = vsub.s32 %v490, %v492
    %v494 = vrot.slane %v198, %v493
    %vm495 = vcmask 786112
    %v496 = vsel %vm495, %v494, %v489
    %v497 = vadd.s32 %v415, 4294967200
    %v498 = vlaneseq
    %v499 = vshrl.u32 %v498, 7
    %v500 = vsub.s32 %v497, %v499
    %v501 = vrot.slane %v201, %v500
    %vm502 = vcmask 851712
    %v503 = vsel %vm502, %v501, %v496
    %v504 = vadd.s32 %v415, 4294967192
    %v505 = vlaneseq
    %v506 = vshrl.u32 %v505, 7
    %v507 = vsub.s32 %v504, %v506
    %v508 = vrot.slane %v204, %v507
    %vm509 = vcmask 917312
    %v510 = vsel %vm509, %v508, %v503
    %v511 = vadd.s32 %v415, 4294967184
    %v512 = vlaneseq
    %v513 = vshrl.u32 %v512, 7
    %v514 = vsub.s32 %v511, %v513
    %v515 = vrot.slane %v207, %v514
    %vm516 = vcmask 982912
    %v517 = vsel %vm516, %v515, %v510
    %v518 = vadd.s32 %v415, 4294967176
    %v519 = vlaneseq
    %v520 = vshrl.u32 %v519, 7
    %v521 = vsub.s32 %v518, %v520
    %v522 = vrot.slane %v210, %v521
    %vm523 = vcmask 1048512
    %v524 = vsel %vm523, %v522, %v517
    %v525 = vlaneseq
    %v526 = vshrl.u32 %v525, 7
    %v527 = vsub.s32 %v415, %v526
    %v528 = vrot.slane %v213, %v527
    %v529 = vlaneseq
    %v530 = vshrl.u32 %v529, 7
    %v531 = vsub.s32 %v420, %v530
    %v532 = vrot.slane %v216, %v531
    %v533 = vsel %vm425, %v532, %v528
    %v534 = vlaneseq
    %v535 = vshrl.u32 %v534, 7
    %v536 = vsub.s32 %v427, %v535
    %v537 = vrot.slane %v219, %v536
    %v538 = vsel %vm432, %v537, %v533
    %v539 = vlaneseq
    %v540 = vshrl.u32 %v539, 7
    %v541 = vsub.s32 %v434, %v540
    %v542 = vrot.slane %v222, %v541
    %v543 = vsel %vm439, %v542, %v538
    %v544 = vlaneseq
    %v545 = vshrl.u32 %v544, 7
    %v546 = vsub.s32 %v441, %v545
    %v547 = vrot.slane %v225, %v546
    %v548 = vsel %vm446, %v547, %v543
    %v549 = vlaneseq
    %v550 = vshrl.u32 %v549, 7
    %v551 = vsub.s32 %v448, %v550
    %v552 = vrot.slane %v228, %v551
    %v553 = vsel %vm453, %v552, %v548
    %v554 = vlaneseq
    %v555 = vshrl.u32 %v554, 7
    %v556 = vsub.s32 %v455, %v555
    %v557 = vrot.slane %v231, %v556
    %v558 = vsel %vm460, %v557, %v553
    %v559 = vlaneseq
    %v560 = vshrl.u32 %v559, 7
    %v561 = vsub.s32 %v462, %v560
    %v562 = vrot.slane %v234, %v561
    %v563 = vsel %vm467, %v562, %v558
    %v564 = vlaneseq
    %v565 = vshrl.u32 %v564, 7
    %v566 = vsub.s32 %v469, %v565
    %v567 = vrot.slane %v237, %v566
    %v568 = vsel %vm474, %v567, %v563
    %v569 = vlaneseq
    %v570 = vshrl.u32 %v569, 7
    %v571 = vsub.s32 %v476, %v570
    %v572 = vrot.slane %v240, %v571
    %v573 = vsel %vm481, %v572, %v568
    %v574 = vlaneseq
    %v575 = vshrl.u32 %v574, 7
    %v576 = vsub.s32 %v483, %v575
    %v577 = vrot.slane %v243, %v576
    %v578 = vsel %vm488, %v577, %v573
    %v579 = vlaneseq
    %v580 = vshrl.u32 %v579, 7
    %v581 = vsub.s32 %v490, %v580
    %v582 = vrot.slane %v246, %v581
    %v583 = vsel %vm495, %v582, %v578
    %v584 = vlaneseq
    %v585 = vshrl.u32 %v584, 7
    %v586 = vsub.s32 %v497, %v585
    %v587 = vrot.slane %v249, %v586
    %v588 = vsel %vm502, %v587, %v583
    %v589 = vlaneseq
    %v590 = vshrl.u32 %v589, 7
    %v591 = vsub.s32 %v504, %v590
    %v592 = vrot.slane %v252, %v591
    %v593 = vsel %vm509, %v592, %v588
    %v594 = vlaneseq
    %v595 = vshrl.u32 %v594, 7
    %v596 = vsub.s32 %v415, %v595
    %v597 = vrot.slane %v255, %v596
    %v598 = vlaneseq
    %v599 = vshrl.u32 %v598, 7
    %v600 = vsub.s32 %v420, %v599
    %v601 = vrot.slane %v258, %v600
    %v602 = vsel %vm425, %v601, %v597
    %v603 = vlaneseq
    %v604 = vshrl.u32 %v603, 7
    %v605 = vsub.s32 %v427, %v604
    %v606 = vrot.slane %v261, %v605
    %v607 = vsel %vm432, %v606, %v602
    %v608 = vlaneseq
    %v609 = vshrl.u32 %v608, 7
    %v610 = vsub.s32 %v434, %v609
    %v611 = vrot.slane %v264, %v610
    %v612 = vsel %vm439, %v611, %v607
    %v613 = vlaneseq
    %v614 = vshrl.u32 %v613, 7
    %v615 = vsub.s32 %v441, %v614
    %v616 = vrot.slane %v267, %v615
    %v617 = vsel %vm446, %v616, %v612
    %v618 = vlaneseq
    %v619 = vshrl.u32 %v618, 7
    %v620 = vsub.s32 %v448, %v619
    %v621 = vrot.slane %v270, %v620
    %v622 = vsel %vm453, %v621, %v617
    %v623 = vlaneseq
    %v624 = vshrl.u32 %v623, 7
    %v625 = vsub.s32 %v455, %v624
    %v626 = vrot.slane %v273, %v625
    %v627 = vsel %vm460, %v626, %v622
    %v628 = vlaneseq
    %v629 = vshrl.u32 %v628, 7
    %v630 = vsub.s32 %v462, %v629
    %v631 = vrot.slane %v276, %v630
    %v632 = vsel %vm467, %v631, %v627
    %v633 = vlaneseq
    %v634 = vshrl.u32 %v633, 7
    %v635 = vsub.s32 %v469, %v634
    %v636 = vrot.slane %v279, %v635
    %v637 = vsel %vm474, %v636, %v632
    %v638 = vlaneseq
    %v639 = vshrl.u32 %v638, 7
    %v640 = vsub.s32 %v476, %v639
    %v641 = vrot.slane %v282, %v640
    %v642 = vsel %vm481, %v641, %v637
    %v643 = vlaneseq
    %v644 = vshrl.u32 %v643, 7
    %v645 = vsub.s32 %v483, %v644
    %v646 = vrot.slane %v285, %v645
    %v647 = vsel %vm488, %v646, %v642
    %v648 = vlaneseq
    %v649 = vshrl.u32 %v648, 7
    %v650 = vsub.s32 %v490, %v649
    %v651 = vrot.slane %v288, %v650
    %v652 = vsel %vm495, %v651, %v647
    %v653 = vlaneseq
    %v654 = vshrl.u32 %v653, 7
    %v655 = vsub.s32 %v497, %v654
    %v656 = vrot.slane %v291, %v655
    %v657 = vsel %vm502, %v656, %v652
    %v658 = vlaneseq
    %v659 = vshrl.u32 %v658, 7
    %v660 = vsub.s32 %v504, %v659
    %v661 = vrot.slane %v294, %v660
    %v662 = vsel %vm509, %v661, %v657
    %v663 = vlaneseq
    %v664 = vshrl.u32 %v663, 7
    %v665 = vsub.s32 %v511, %v664
    %v666 = vrot.slane %v297, %v665
    %v667 = vsel %vm516, %v666, %v662
    %v668 = vlaneseq
    %v669 = vshrl.u32 %v668, 7
    %v670 = vsub.s32 %v518, %v669
    %v671 = vrot.slane %v300, %v670
    %v672 = vsel %vm523, %v671, %v667
    %v673 = vlaneseq
    %v674 = vshrl.u32 %v673, 7
    %v675 = vsub.s32 %v415, %v674
    %v676 = vrot.slane %v303, %v675
    %v677 = vlaneseq
    %v678 = vshrl.u32 %v677, 7
    %v679 = vsub.s32 %v420, %v678
    %v680 = vrot.slane %v306, %v679
    %v681 = vsel %vm425, %v680, %v676
    %v682 = vlaneseq
    %v683 = vshrl.u32 %v682, 7
    %v684 = vsub.s32 %v427, %v683
    %v685 = vrot.slane %v309, %v684
    %v686 = vsel %vm432, %v685, %v681
    %v687 = vlaneseq
    %v688 = vshrl.u32 %v687, 7
    %v689 = vsub.s32 %v434, %v688
    %v690 = vrot.slane %v312, %v689
    %v691 = vsel %vm439, %v690, %v686
    %v692 = vlaneseq
    %v693 = vshrl.u32 %v692, 7
    %v694 = vsub.s32 %v441, %v693
    %v695 = vrot.slane %v315, %v694
    %v696 = vsel %vm446, %v695, %v691
    %v697 = vlaneseq
    %v698 = vshrl.u32 %v697, 7
    %v699 = vsub.s32 %v448, %v698
    %v700 = vrot.slane %v318, %v699
    %v701 = vsel %vm453, %v700, %v696
    %v702 = vlaneseq
    %v703 = vshrl.u32 %v702, 7
    %v704 = vsub.s32 %v455, %v703
    %v705 = vrot.slane %v321, %v704
    %v706 = vsel %vm460, %v705, %v701
    %v707 = vlaneseq
    %v708 = vshrl.u32 %v707, 7
    %v709 = vsub.s32 %v462, %v708
    %v710 = vrot.slane %v324, %v709
    %v711 = vsel %vm467, %v710, %v706
    %v712 = vlaneseq
    %v713 = vshrl.u32 %v712, 7
    %v714 = vsub.s32 %v469, %v713
    %v715 = vrot.slane %v327, %v714
    %v716 = vsel %vm474, %v715, %v711
    %v717 = vlaneseq
    %v718 = vshrl.u32 %v717, 7
    %v719 = vsub.s32 %v476, %v718
    %v720 = vrot.slane %v330, %v719
    %v721 = vsel %vm481, %v720, %v716
    %v722 = vlaneseq
    %v723 = vshrl.u32 %v722, 7
    %v724 = vsub.s32 %v483, %v723
    %v725 = vrot.slane %v333, %v724
    %v726 = vsel %vm488, %v725, %v721
    %v727 = vlaneseq
    %v728 = vshrl.u32 %v727, 7
    %v729 = vsub.s32 %v490, %v728
    %v730 = vrot.slane %v336, %v729
    %v731 = vsel %vm495, %v730, %v726
    %v732 = vlaneseq
    %v733 = vshrl.u32 %v732, 7
    %v734 = vsub.s32 %v497, %v733
    %v735 = vrot.slane %v339, %v734
    %v736 = vsel %vm502, %v735, %v731
    %v737 = vlaneseq
    %v738 = vshrl.u32 %v737, 7
    %v739 = vsub.s32 %v504, %v738
    %v740 = vrot.slane %v342, %v739
    %v741 = vsel %vm509, %v740, %v736
    %vm742 = vcmask 1041409
    %v743 = vsel %vm742, %v672, %v524
    %v744 = vsel %vm742, %v741, %v593
    %vm746 = vcmask 916480
    %v747 = vsel %vm746, %v744, 0
    %v750 = vsel %vm746, %v344, 0
    %v753 = vsel %vm746, %v346, 0
    %755 = vmatprep.subr.mxu0 0.0
    %756 = vmatpush1.xpose.msra.mxu0 0.0
    %757 = vmatprep.subr.mxu0 0.0
    %758 = vmatpush1.xpose.msra.mxu0 0.0
    %759 = vmatprep.subr.mxu0 0.0
    %760 = vmatpush1.xpose.msra.mxu0 0.0
    %761 = vmatprep.subr.mxu0 0.0
    %762 = vmatpush1.xpose.msra.mxu0 0.0
    %763 = vmatprep.subr.mxu0 0.0
    %764 = vmatpush1.xpose.msra.mxu0 0.0
    %765 = vmatprep.subr.mxu0 0.0
    %766 = vmatpush1.xpose.msra.mxu0 0.0
    %767 = vmatprep.subr.mxu0 0.0
    %768 = vmatpush1.xpose.msra.mxu0 0.0
    %769 = vmatprep.subr.mxu0 0.0
    %770 = vmatpush1.xpose.msra.mxu0 0.0
    %771 = vmatprep.subr.mxu0 0.0
    %772 = vmatpush1.xpose.msra.mxu0 0.0
    %773 = vmatprep.subr.mxu0 0.0
    %774 = vmatpush1.xpose.msra.mxu0 0.0
    %775 = vmatprep.subr.mxu0 0.0
    %776 = vmatpush1.xpose.msra.mxu0 0.0
    %777 = vmatprep.subr.mxu0 0.0
    %778 = vmatpush1.xpose.msra.mxu0 0.0
    %779 = vmatprep.subr.mxu0 0.0
    %780 = vmatpush1.xpose.msra.mxu0 0.0
    %781 = vmatprep.subr.mxu0 0.0
    %782 = vmatpush1.xpose.msra.mxu0 0.0
    %783 = vmatprep.subr.mxu0 %v753
    %784 = vmatpush1.xpose.msra.mxu0 %v345
    %785 = vmatprep.subr.mxu0 %v750
    %786 = vmatpush1.xpose.msra.mxu0 %v343
    %787 = vmatprep.subr.mxu0 0.0
    %788 = vmatpush2.xpose.msra.mxu0 0.0
    %789 = vmatprep.subr.mxu0 0.0
    %790 = vmatpush2.xpose.msra.mxu0 0.0
    %791 = vmatprep.subr.mxu0 0.0
    %792 = vmatpush2.xpose.msra.mxu0 0.0
    %793 = vmatprep.subr.mxu0 0.0
    %794 = vmatpush2.xpose.msra.mxu0 0.0
    %795 = vmatprep.subr.mxu0 0.0
    %796 = vmatpush2.xpose.msra.mxu0 0.0
    %797 = vmatprep.subr.mxu0 0.0
    %798 = vmatpush2.xpose.msra.mxu0 0.0
    %799 = vmatprep.subr.mxu0 0.0
    %800 = vmatpush2.xpose.msra.mxu0 0.0
    %801 = vmatprep.subr.mxu0 0.0
    %802 = vmatpush2.xpose.msra.mxu0 0.0
    %803 = vmatprep.subr.mxu0 0.0
    %804 = vmatpush2.xpose.msra.mxu0 0.0
    %805 = vmatprep.subr.mxu0 0.0
    %806 = vmatpush2.xpose.msra.mxu0 0.0
    %807 = vmatprep.subr.mxu0 0.0
    %808 = vmatpush2.xpose.msra.mxu0 0.0
    %809 = vmatprep.subr.mxu0 0.0
    %810 = vmatpush2.xpose.msra.mxu0 0.0
    %811 = vmatprep.subr.mxu0 0.0
    %812 = vmatpush2.xpose.msra.mxu0 0.0
    %813 = vmatprep.subr.mxu0 0.0
    %814 = vmatpush2.xpose.msra.mxu0 0.0
    %815 = vmatprep.subr.mxu0 0.0
    %816 = vmatpush2.xpose.msra.mxu0 0.0
    %817 = vmatprep.subr.mxu0 0.0
    %818 = vmatpush2.xpose.msra.mxu0 0.0
    %819 = vmatprep.mubr.f32.mxu0 %v747
    %820 = vmatmul.mubr.f32.gmra.mxu0 %v743
    %v821 = vpop.f32.mrf.mxu0
    %v822 = vadd.f32 %v352, %v821
    %v823 = vpop.f32.mrf.mxu0
    %824 = vdwg.mxu0
    %vm825 = vcmask 74752
    %826 = vst.msk [vmem:[#allocation7] sm:$0x3] %vm825, %v822
    // Predicated region
    $region22: #{tpu_custom_call.1} parent=1 // pred_check
      _
    $region23: #{tpu_custom_call.1} parent=1 // pred_check_branch
      %828 = sbr.rel (0) target = $region25
    $region24: #{tpu_custom_call.1} parent=1 // pred_region
      %s830 = ssub.s32 32, 32
      %831 = vsyncadd [#allocation4], %s830
      %s833 = sshll.u32 [#allocation7], 4
      %s834 = int_to_ptr.vmem [resolvable:$true] %s833
      %836 = dma.vmem_to_hbm [thread:$0]  %s834, 32, %s3, [#allocation4]
    $region25: #{tpu_custom_call.1} parent=1 // pred_fallthru
      _
    // Predicated region
    $region26: #{tpu_custom_call.1} parent=1 // pred_check
      _
    $region27: #{tpu_custom_call.1} parent=1 // pred_check_branch
      %838 = sbr.rel (0) target = $region29
    $region28: #{tpu_custom_call.1} parent=1 // pred_region
      %839 = dma.done [#allocation4], 32
    $region29: #{tpu_custom_call.1} parent=1 // pred_fallthru
      _
    %840 = vsyncpa [#allocation3], 1
    %841 = vsyncpa [#allocation6], 1
    %842 = vsyncpa [#allocation4], 1

</llo_original>
